<compile_context>
chip_gen: v7x
topology: tpu7x:2x2x1
jax: 0.10.0
libtpu: 0.0.40
codegen_flags: <defaults>
</compile_context>

<pallas_src>
import jax
import jax.numpy as jnp
from jax.experimental import pallas as pl
from jax.experimental.pallas import tpu as pltpu

_LANE = 128
_SUBLANE = 8
# Block budget: 4x (double-buffered input + output block) must stay under the
# scoped-VMEM limit on every generation (v7x has only 64 MiB physical per TC).
_MAX_BLOCK_BYTES = 12 * 1024 * 1024
_VMEM_LIMIT_BYTES = 48 * 1024 * 1024


def _fused_conv1x1x2_kernel(w0_ref, b0_ref, w1_ref, b1_ref, x_ref, o_ref):
    """Fused [1x1 conv -> sigmoid] x 2.

    w0_ref/w1_ref: (C, C) f32 in SMEM (PyTorch (c_out, c_in) layout).
    b0_ref/b1_ref: (C,)   f32 in SMEM.
    x_ref/o_ref:   (N, C, tq, 128) f32 in VMEM.  Each channel plane
                   x_ref[:, c, :, :] is a lane/sublane-dense (N, tq, 128) slab.
    """
    C = x_ref.shape[1]

    def sigmoid(v):
        # Exact sigmoid: kernel is HBM-bandwidth bound, so the EUP exp and the
        # exact divide are free under the DMA roofline.
        return 1.0 / (1.0 + jnp.exp(-v))

    # Per-input-channel lane/sublane-dense planes, each (N, tq, 128).
    xs = [x_ref[:, c, :, :] for c in range(C)]

    # Stage 0: h[co] = sigmoid(sum_c w0[co, c] * x[c] + b0[co])
    hs = []
    for co in range(C):
        acc = xs[0] * w0_ref[co, 0]
        for c in range(1, C):
            acc = acc + xs[c] * w0_ref[co, c]
        hs.append(sigmoid(acc + b0_ref[co]))

    # Stage 1: y[co] = sigmoid(sum_c w1[co, c] * h[c] + b1[co])
    for co in range(C):
        acc = hs[0] * w1_ref[co, 0]
        for c in range(1, C):
            acc = acc + hs[c] * w1_ref[co, c]
        o_ref[:, co, :, :] = sigmoid(acc + b1_ref[co]).astype(o_ref.dtype)


def _pick_row_tile(n, c, nq, itemsize):
    """Pick (tq, nq_padded): tq rows of 128 lanes per block along the pixel axis.

    * If the whole array fits in one <=12 MiB block, use a single grid step
      (per-step overhead ~0.35us dominates tiny tiles; v5e/v6e have one TC so
      splitting small work is pure overhead, and sub-MiB steps lose on v7x too).
    * Otherwise use the largest sublane-aligned (multiple of 8) tq that keeps
      the block under the budget, padding nq up so tq divides it.
    """
    row_bytes = n * c * _LANE * itemsize
    total_bytes = row_bytes * nq
    if total_bytes <= _MAX_BLOCK_BYTES or nq <= _SUBLANE:
        return nq, nq  # single full-extent block, grid=(1,)
    tq = (_MAX_BLOCK_BYTES // row_bytes) // _SUBLANE * _SUBLANE
    # Guard: with a huge N*C even tq=8 can exceed the budget; keep the minimum
    # legal sublane-aligned tile (edge case far beyond this module's shapes).
    tq = max(_SUBLANE, tq)
    tq = min(tq, nq)
    nq_padded = pl.cdiv(nq, tq) * tq
    return tq, nq_padded


@jax.jit
def sample_module2_forward(x_nchw, w0, b0, w1, b1):
    """x_nchw: [N, C, H, W]; w*: [C_out, C_in, 1, 1] (PyTorch conv layout); b*: [C_out]."""
    N, C, H, W = x_nchw.shape
    HW = H * W
    itemsize = x_nchw.dtype.itemsize

    # Pad the flattened pixel axis to a multiple of 128 lanes so every store is
    # an unmasked lane-dense vst, then view it sublane-dense as (nq, 128) rows.
    nq = pl.cdiv(HW, _LANE)
    tq, nq_padded = _pick_row_tile(N, C, nq, itemsize)
    HW_padded = nq_padded * _LANE

    x_flat = x_nchw.reshape(N, C, HW)                 # free contiguous reshape
    if HW_padded != HW:
        x_flat = jnp.pad(x_flat, ((0, 0), (0, 0), (0, HW_padded - HW)))
    x4 = x_flat.reshape(N, C, nq_padded, _LANE)       # free contiguous reshape

    grid = (nq_padded // tq,)

    smem_spec = pl.BlockSpec(memory_space=pltpu.MemorySpace.SMEM)
    pix_spec = pl.BlockSpec((N, C, tq, _LANE), lambda i: (0, 0, i, 0))

    # 1x1 conv weights (c_out, c_in, 1, 1) -> (c_out, c_in) scalars for SMEM.
    w0_2d = w0[:, :, 0, 0]
    w1_2d = w1[:, :, 0, 0]

    cost = pl.CostEstimate(
        flops=4 * N * C * C * HW_padded,              # 2 stages x 2*N*C*C*HW MACs
        transcendentals=2 * N * C * HW_padded,        # one exp per element per stage
        bytes_accessed=2 * N * C * HW_padded * itemsize,
    )

    out4 = pl.pallas_call(
        _fused_conv1x1x2_kernel,
        out_shape=jax.ShapeDtypeStruct((N, C, nq_padded, _LANE), x_nchw.dtype),
        grid_spec=pltpu.PrefetchScalarGridSpec(
            num_scalar_prefetch=0,
            grid=grid,
            in_specs=[
                smem_spec,   # w0 (C, C) scalars
                smem_spec,   # b0 (C,)
                smem_spec,   # w1 (C, C)
                smem_spec,   # b1 (C,)
                pix_spec,    # x  (N, C, tq, 128) sublane/lane-dense pixel tile
            ],
            out_specs=pix_spec,
        ),
        compiler_params=pltpu.CompilerParams(
            dimension_semantics=("parallel",),
            vmem_limit_bytes=_VMEM_LIMIT_BYTES,
        ),
        cost_estimate=cost,
    )(w0_2d, b0, w1_2d, b1, x4)

    out_flat = out4.reshape(N, C, HW_padded)
    if HW_padded != HW:
        out_flat = out_flat[:, :, :HW]
    return out_flat.reshape(N, C, H, W)


def _reference_forward(x_nchw, w0, b0, w1, b1):
    """Pure-JAX reference matching the PyTorch forward semantics."""
    def conv1x1_sigmoid(x, w, b):
        # x: [N, C, H, W], w: [Co, Ci, 1, 1], b: [Co]
        y = jnp.einsum("nchw,oc->nohw", x, w[:, :, 0, 0]) + b[None, :, None, None]
        return jax.nn.sigmoid(y)

    return conv1x1_sigmoid(conv1x1_sigmoid(x_nchw, w0, b0), w1, b1)


if __name__ == "__main__":
    # Small shapes consistent with the module: num_features=4 channels,
    # kernel_size=1, batch=2, spatial=16x16.
    N, C, H, W = 2, 4, 16, 16

    key = jax.random.PRNGKey(0)
    kx, kw0, kb0, kw1, kb1 = jax.random.split(key, 5)

    x = jax.random.normal(kx, (N, C, H, W), dtype=jnp.float32)

    # Deterministic init mimicking torch.nn.Conv2d default: U(-1/sqrt(fan_in), +1/sqrt(fan_in)).
    fan_in = C * 1 * 1
    bound = 1.0 / (fan_in ** 0.5)
    w0 = jax.random.uniform(kw0, (C, C, 1, 1), jnp.float32, -bound, bound)
    b0 = jax.random.uniform(kb0, (C,), jnp.float32, -bound, bound)
    w1 = jax.random.uniform(kw1, (C, C, 1, 1), jnp.float32, -bound, bound)
    b1 = jax.random.uniform(kb1, (C,), jnp.float32, -bound, bound)

    out = sample_module2_forward(x, w0, b0, w1, b1)
    out = jax.block_until_ready(out)

    ref = _reference_forward(x, w0, b0, w1, b1)
    assert out.shape == (N, C, H, W)
    # Exact sigmoid in-kernel -> tight tolerance vs. the JAX reference.
    assert jnp.allclose(out, ref, atol=1e-5, rtol=1e-5), "mismatch vs reference"

    print("KERNEL_OK")
</pallas_src>

<mosaic_0001>
module attributes {stable_mosaic.version = 11 : i64} {
  func.func @_fused_conv1x1x2_kernel(%arg0: i32, %arg1: memref<4x4xf32, #tpu.memory_space<smem>>, %arg2: memref<4xf32, #tpu.memory_space<smem>>, %arg3: memref<4x4xf32, #tpu.memory_space<smem>>, %arg4: memref<4xf32, #tpu.memory_space<smem>>, %arg5: memref<2x4x2x128xf32, #tpu.memory_space<vmem>>, %arg6: memref<2x4x2x128xf32, #tpu.memory_space<vmem>>) attributes {dimension_semantics = [#tpu.dimension_semantics<parallel>], iteration_bounds = array<i64: 1>, scalar_prefetch = 0 : i64, scratch_operands = 0 : i64, tpu.core_type = #tpu.core_type<tc>, window_params = [{transform_indices = @transform_0, window_bounds = array<i64: 4, 4>}, {transform_indices = @transform_1, window_bounds = array<i64: 4>}, {transform_indices = @transform_2, window_bounds = array<i64: 4, 4>}, {transform_indices = @transform_3, window_bounds = array<i64: 4>}, {transform_indices = @transform_4, window_bounds = array<i64: 2, 4, 2, 128>}, {transform_indices = @transform_5, window_bounds = array<i64: 2, 4, 2, 128>}]} {
    %c0 = arith.constant 0 : index
    %c0_0 = arith.constant 0 : index
    %c0_1 = arith.constant 0 : index
    %c0_2 = arith.constant 0 : index
    %0 = vector.load %arg5[%c0, %c0_0, %c0_1, %c0_2] : memref<2x4x2x128xf32, #tpu.memory_space<vmem>>, vector<2x1x2x128xf32>
    %1 = vector.shape_cast %0 : vector<2x1x2x128xf32> to vector<2x2x128xf32>
    %c0_3 = arith.constant 0 : index
    %c1 = arith.constant 1 : index
    %c0_4 = arith.constant 0 : index
    %c0_5 = arith.constant 0 : index
    %2 = vector.load %arg5[%c0_3, %c1, %c0_4, %c0_5] : memref<2x4x2x128xf32, #tpu.memory_space<vmem>>, vector<2x1x2x128xf32>
    %3 = vector.shape_cast %2 : vector<2x1x2x128xf32> to vector<2x2x128xf32>
    %c0_6 = arith.constant 0 : index
    %c2 = arith.constant 2 : index
    %c0_7 = arith.constant 0 : index
    %c0_8 = arith.constant 0 : index
    %4 = vector.load %arg5[%c0_6, %c2, %c0_7, %c0_8] : memref<2x4x2x128xf32, #tpu.memory_space<vmem>>, vector<2x1x2x128xf32>
    %5 = vector.shape_cast %4 : vector<2x1x2x128xf32> to vector<2x2x128xf32>
    %c0_9 = arith.constant 0 : index
    %c3 = arith.constant 3 : index
    %c0_10 = arith.constant 0 : index
    %c0_11 = arith.constant 0 : index
    %6 = vector.load %arg5[%c0_9, %c3, %c0_10, %c0_11] : memref<2x4x2x128xf32, #tpu.memory_space<vmem>>, vector<2x1x2x128xf32>
    %7 = vector.shape_cast %6 : vector<2x1x2x128xf32> to vector<2x2x128xf32>
    %c0_12 = arith.constant 0 : index
    %c0_13 = arith.constant 0 : index
    %8 = memref.load %arg1[%c0_12, %c0_13] : memref<4x4xf32, #tpu.memory_space<smem>>
    %9 = vector.broadcast %8 : f32 to vector<2x2x128xf32>
    %10 = arith.mulf %1, %9 : vector<2x2x128xf32>
    %c0_14 = arith.constant 0 : index
    %c1_15 = arith.constant 1 : index
    %11 = memref.load %arg1[%c0_14, %c1_15] : memref<4x4xf32, #tpu.memory_space<smem>>
    %12 = vector.broadcast %11 : f32 to vector<2x2x128xf32>
    %13 = arith.mulf %3, %12 : vector<2x2x128xf32>
    %14 = arith.addf %10, %13 : vector<2x2x128xf32>
    %c0_16 = arith.constant 0 : index
    %c2_17 = arith.constant 2 : index
    %15 = memref.load %arg1[%c0_16, %c2_17] : memref<4x4xf32, #tpu.memory_space<smem>>
    %16 = vector.broadcast %15 : f32 to vector<2x2x128xf32>
    %17 = arith.mulf %5, %16 : vector<2x2x128xf32>
    %18 = arith.addf %14, %17 : vector<2x2x128xf32>
    %c0_18 = arith.constant 0 : index
    %c3_19 = arith.constant 3 : index
    %19 = memref.load %arg1[%c0_18, %c3_19] : memref<4x4xf32, #tpu.memory_space<smem>>
    %20 = vector.broadcast %19 : f32 to vector<2x2x128xf32>
    %21 = arith.mulf %7, %20 : vector<2x2x128xf32>
    %22 = arith.addf %18, %21 : vector<2x2x128xf32>
    %c0_20 = arith.constant 0 : index
    %23 = memref.load %arg2[%c0_20] : memref<4xf32, #tpu.memory_space<smem>>
    %24 = vector.broadcast %23 : f32 to vector<2x2x128xf32>
    %25 = arith.addf %22, %24 : vector<2x2x128xf32>
    %cst = arith.constant 0.000000e+00 : f32
    %26 = vector.broadcast %cst : f32 to vector<2x2x128xf32>
    %27 = arith.subf %26, %25 : vector<2x2x128xf32>
    %28 = math.exp %27 : vector<2x2x128xf32>
    %cst_21 = arith.constant 1.000000e+00 : f32
    %29 = vector.broadcast %cst_21 : f32 to vector<2x2x128xf32>
    %30 = arith.addf %29, %28 : vector<2x2x128xf32>
    %cst_22 = arith.constant 1.000000e+00 : f32
    %31 = vector.broadcast %cst_22 : f32 to vector<2x2x128xf32>
    %32 = arith.divf %31, %30 : vector<2x2x128xf32>
    %c1_23 = arith.constant 1 : index
    %c0_24 = arith.constant 0 : index
    %33 = memref.load %arg1[%c1_23, %c0_24] : memref<4x4xf32, #tpu.memory_space<smem>>
    %34 = vector.broadcast %33 : f32 to vector<2x2x128xf32>
    %35 = arith.mulf %1, %34 : vector<2x2x128xf32>
    %c1_25 = arith.constant 1 : index
    %c1_26 = arith.constant 1 : index
    %36 = memref.load %arg1[%c1_25, %c1_26] : memref<4x4xf32, #tpu.memory_space<smem>>
    %37 = vector.broadcast %36 : f32 to vector<2x2x128xf32>
    %38 = arith.mulf %3, %37 : vector<2x2x128xf32>
    %39 = arith.addf %35, %38 : vector<2x2x128xf32>
    %c1_27 = arith.constant 1 : index
    %c2_28 = arith.constant 2 : index
    %40 = memref.load %arg1[%c1_27, %c2_28] : memref<4x4xf32, #tpu.memory_space<smem>>
    %41 = vector.broadcast %40 : f32 to vector<2x2x128xf32>
    %42 = arith.mulf %5, %41 : vector<2x2x128xf32>
    %43 = arith.addf %39, %42 : vector<2x2x128xf32>
    %c1_29 = arith.constant 1 : index
    %c3_30 = arith.constant 3 : index
    %44 = memref.load %arg1[%c1_29, %c3_30] : memref<4x4xf32, #tpu.memory_space<smem>>
    %45 = vector.broadcast %44 : f32 to vector<2x2x128xf32>
    %46 = arith.mulf %7, %45 : vector<2x2x128xf32>
    %47 = arith.addf %43, %46 : vector<2x2x128xf32>
    %c1_31 = arith.constant 1 : index
    %48 = memref.load %arg2[%c1_31] : memref<4xf32, #tpu.memory_space<smem>>
    %49 = vector.broadcast %48 : f32 to vector<2x2x128xf32>
    %50 = arith.addf %47, %49 : vector<2x2x128xf32>
    %cst_32 = arith.constant 0.000000e+00 : f32
    %51 = vector.broadcast %cst_32 : f32 to vector<2x2x128xf32>
    %52 = arith.subf %51, %50 : vector<2x2x128xf32>
    %53 = math.exp %52 : vector<2x2x128xf32>
    %cst_33 = arith.constant 1.000000e+00 : f32
    %54 = vector.broadcast %cst_33 : f32 to vector<2x2x128xf32>
    %55 = arith.addf %54, %53 : vector<2x2x128xf32>
    %cst_34 = arith.constant 1.000000e+00 : f32
    %56 = vector.broadcast %cst_34 : f32 to vector<2x2x128xf32>
    %57 = arith.divf %56, %55 : vector<2x2x128xf32>
    %c2_35 = arith.constant 2 : index
    %c0_36 = arith.constant 0 : index
    %58 = memref.load %arg1[%c2_35, %c0_36] : memref<4x4xf32, #tpu.memory_space<smem>>
    %59 = vector.broadcast %58 : f32 to vector<2x2x128xf32>
    %60 = arith.mulf %1, %59 : vector<2x2x128xf32>
    %c2_37 = arith.constant 2 : index
    %c1_38 = arith.constant 1 : index
    %61 = memref.load %arg1[%c2_37, %c1_38] : memref<4x4xf32, #tpu.memory_space<smem>>
    %62 = vector.broadcast %61 : f32 to vector<2x2x128xf32>
    %63 = arith.mulf %3, %62 : vector<2x2x128xf32>
    %64 = arith.addf %60, %63 : vector<2x2x128xf32>
    %c2_39 = arith.constant 2 : index
    %c2_40 = arith.constant 2 : index
    %65 = memref.load %arg1[%c2_39, %c2_40] : memref<4x4xf32, #tpu.memory_space<smem>>
    %66 = vector.broadcast %65 : f32 to vector<2x2x128xf32>
    %67 = arith.mulf %5, %66 : vector<2x2x128xf32>
    %68 = arith.addf %64, %67 : vector<2x2x128xf32>
    %c2_41 = arith.constant 2 : index
    %c3_42 = arith.constant 3 : index
    %69 = memref.load %arg1[%c2_41, %c3_42] : memref<4x4xf32, #tpu.memory_space<smem>>
    %70 = vector.broadcast %69 : f32 to vector<2x2x128xf32>
    %71 = arith.mulf %7, %70 : vector<2x2x128xf32>
    %72 = arith.addf %68, %71 : vector<2x2x128xf32>
    %c2_43 = arith.constant 2 : index
    %73 = memref.load %arg2[%c2_43] : memref<4xf32, #tpu.memory_space<smem>>
    %74 = vector.broadcast %73 : f32 to vector<2x2x128xf32>
    %75 = arith.addf %72, %74 : vector<2x2x128xf32>
    %cst_44 = arith.constant 0.000000e+00 : f32
    %76 = vector.broadcast %cst_44 : f32 to vector<2x2x128xf32>
    %77 = arith.subf %76, %75 : vector<2x2x128xf32>
    %78 = math.exp %77 : vector<2x2x128xf32>
    %cst_45 = arith.constant 1.000000e+00 : f32
    %79 = vector.broadcast %cst_45 : f32 to vector<2x2x128xf32>
    %80 = arith.addf %79, %78 : vector<2x2x128xf32>
    %cst_46 = arith.constant 1.000000e+00 : f32
    %81 = vector.broadcast %cst_46 : f32 to vector<2x2x128xf32>
    %82 = arith.divf %81, %80 : vector<2x2x128xf32>
    %c3_47 = arith.constant 3 : index
    %c0_48 = arith.constant 0 : index
    %83 = memref.load %arg1[%c3_47, %c0_48] : memref<4x4xf32, #tpu.memory_space<smem>>
    %84 = vector.broadcast %83 : f32 to vector<2x2x128xf32>
    %85 = arith.mulf %1, %84 : vector<2x2x128xf32>
    %c3_49 = arith.constant 3 : index
    %c1_50 = arith.constant 1 : index
    %86 = memref.load %arg1[%c3_49, %c1_50] : memref<4x4xf32, #tpu.memory_space<smem>>
    %87 = vector.broadcast %86 : f32 to vector<2x2x128xf32>
    %88 = arith.mulf %3, %87 : vector<2x2x128xf32>
    %89 = arith.addf %85, %88 : vector<2x2x128xf32>
    %c3_51 = arith.constant 3 : index
    %c2_52 = arith.constant 2 : index
    %90 = memref.load %arg1[%c3_51, %c2_52] : memref<4x4xf32, #tpu.memory_space<smem>>
    %91 = vector.broadcast %90 : f32 to vector<2x2x128xf32>
    %92 = arith.mulf %5, %91 : vector<2x2x128xf32>
    %93 = arith.addf %89, %92 : vector<2x2x128xf32>
    %c3_53 = arith.constant 3 : index
    %c3_54 = arith.constant 3 : index
    %94 = memref.load %arg1[%c3_53, %c3_54] : memref<4x4xf32, #tpu.memory_space<smem>>
    %95 = vector.broadcast %94 : f32 to vector<2x2x128xf32>
    %96 = arith.mulf %7, %95 : vector<2x2x128xf32>
    %97 = arith.addf %93, %96 : vector<2x2x128xf32>
    %c3_55 = arith.constant 3 : index
    %98 = memref.load %arg2[%c3_55] : memref<4xf32, #tpu.memory_space<smem>>
    %99 = vector.broadcast %98 : f32 to vector<2x2x128xf32>
    %100 = arith.addf %97, %99 : vector<2x2x128xf32>
    %cst_56 = arith.constant 0.000000e+00 : f32
    %101 = vector.broadcast %cst_56 : f32 to vector<2x2x128xf32>
    %102 = arith.subf %101, %100 : vector<2x2x128xf32>
    %103 = math.exp %102 : vector<2x2x128xf32>
    %cst_57 = arith.constant 1.000000e+00 : f32
    %104 = vector.broadcast %cst_57 : f32 to vector<2x2x128xf32>
    %105 = arith.addf %104, %103 : vector<2x2x128xf32>
    %cst_58 = arith.constant 1.000000e+00 : f32
    %106 = vector.broadcast %cst_58 : f32 to vector<2x2x128xf32>
    %107 = arith.divf %106, %105 : vector<2x2x128xf32>
    %c0_59 = arith.constant 0 : index
    %c0_60 = arith.constant 0 : index
    %108 = memref.load %arg3[%c0_59, %c0_60] : memref<4x4xf32, #tpu.memory_space<smem>>
    %109 = vector.broadcast %108 : f32 to vector<2x2x128xf32>
    %110 = arith.mulf %32, %109 : vector<2x2x128xf32>
    %c0_61 = arith.constant 0 : index
    %c1_62 = arith.constant 1 : index
    %111 = memref.load %arg3[%c0_61, %c1_62] : memref<4x4xf32, #tpu.memory_space<smem>>
    %112 = vector.broadcast %111 : f32 to vector<2x2x128xf32>
    %113 = arith.mulf %57, %112 : vector<2x2x128xf32>
    %114 = arith.addf %110, %113 : vector<2x2x128xf32>
    %c0_63 = arith.constant 0 : index
    %c2_64 = arith.constant 2 : index
    %115 = memref.load %arg3[%c0_63, %c2_64] : memref<4x4xf32, #tpu.memory_space<smem>>
    %116 = vector.broadcast %115 : f32 to vector<2x2x128xf32>
    %117 = arith.mulf %82, %116 : vector<2x2x128xf32>
    %118 = arith.addf %114, %117 : vector<2x2x128xf32>
    %c0_65 = arith.constant 0 : index
    %c3_66 = arith.constant 3 : index
    %119 = memref.load %arg3[%c0_65, %c3_66] : memref<4x4xf32, #tpu.memory_space<smem>>
    %120 = vector.broadcast %119 : f32 to vector<2x2x128xf32>
    %121 = arith.mulf %107, %120 : vector<2x2x128xf32>
    %122 = arith.addf %118, %121 : vector<2x2x128xf32>
    %c0_67 = arith.constant 0 : index
    %123 = memref.load %arg4[%c0_67] : memref<4xf32, #tpu.memory_space<smem>>
    %124 = vector.broadcast %123 : f32 to vector<2x2x128xf32>
    %125 = arith.addf %122, %124 : vector<2x2x128xf32>
    %cst_68 = arith.constant 0.000000e+00 : f32
    %126 = vector.broadcast %cst_68 : f32 to vector<2x2x128xf32>
    %127 = arith.subf %126, %125 : vector<2x2x128xf32>
    %128 = math.exp %127 : vector<2x2x128xf32>
    %cst_69 = arith.constant 1.000000e+00 : f32
    %129 = vector.broadcast %cst_69 : f32 to vector<2x2x128xf32>
    %130 = arith.addf %129, %128 : vector<2x2x128xf32>
    %cst_70 = arith.constant 1.000000e+00 : f32
    %131 = vector.broadcast %cst_70 : f32 to vector<2x2x128xf32>
    %132 = arith.divf %131, %130 : vector<2x2x128xf32>
    %c0_71 = arith.constant 0 : index
    %c0_72 = arith.constant 0 : index
    %c0_73 = arith.constant 0 : index
    %c0_74 = arith.constant 0 : index
    %133 = vector.load %arg6[%c0_71, %c0_72, %c0_73, %c0_74] : memref<2x4x2x128xf32, #tpu.memory_space<vmem>>, vector<2x1x2x128xf32>
    %134 = vector.shape_cast %133 : vector<2x1x2x128xf32> to vector<2x2x128xf32>
    %135 = vector.shape_cast %132 : vector<2x2x128xf32> to vector<2x1x2x128xf32>
    tpu.vector_store %arg6[%c0_71, %c0_72, %c0_73, %c0_74], %135 {strides = array<i32>} : memref<2x4x2x128xf32, #tpu.memory_space<vmem>>, vector<2x1x2x128xf32>,
    %c1_75 = arith.constant 1 : index
    %c0_76 = arith.constant 0 : index
    %136 = memref.load %arg3[%c1_75, %c0_76] : memref<4x4xf32, #tpu.memory_space<smem>>
    %137 = vector.broadcast %136 : f32 to vector<2x2x128xf32>
    %138 = arith.mulf %32, %137 : vector<2x2x128xf32>
    %c1_77 = arith.constant 1 : index
    %c1_78 = arith.constant 1 : index
    %139 = memref.load %arg3[%c1_77, %c1_78] : memref<4x4xf32, #tpu.memory_space<smem>>
    %140 = vector.broadcast %139 : f32 to vector<2x2x128xf32>
    %141 = arith.mulf %57, %140 : vector<2x2x128xf32>
    %142 = arith.addf %138, %141 : vector<2x2x128xf32>
    %c1_79 = arith.constant 1 : index
    %c2_80 = arith.constant 2 : index
    %143 = memref.load %arg3[%c1_79, %c2_80] : memref<4x4xf32, #tpu.memory_space<smem>>
    %144 = vector.broadcast %143 : f32 to vector<2x2x128xf32>
    %145 = arith.mulf %82, %144 : vector<2x2x128xf32>
    %146 = arith.addf %142, %145 : vector<2x2x128xf32>
    %c1_81 = arith.constant 1 : index
    %c3_82 = arith.constant 3 : index
    %147 = memref.load %arg3[%c1_81, %c3_82] : memref<4x4xf32, #tpu.memory_space<smem>>
    %148 = vector.broadcast %147 : f32 to vector<2x2x128xf32>
    %149 = arith.mulf %107, %148 : vector<2x2x128xf32>
    %150 = arith.addf %146, %149 : vector<2x2x128xf32>
    %c1_83 = arith.constant 1 : index
    %151 = memref.load %arg4[%c1_83] : memref<4xf32, #tpu.memory_space<smem>>
    %152 = vector.broadcast %151 : f32 to vector<2x2x128xf32>
    %153 = arith.addf %150, %152 : vector<2x2x128xf32>
    %cst_84 = arith.constant 0.000000e+00 : f32
    %154 = vector.broadcast %cst_84 : f32 to vector<2x2x128xf32>
    %155 = arith.subf %154, %153 : vector<2x2x128xf32>
    %156 = math.exp %155 : vector<2x2x128xf32>
    %cst_85 = arith.constant 1.000000e+00 : f32
    %157 = vector.broadcast %cst_85 : f32 to vector<2x2x128xf32>
    %158 = arith.addf %157, %156 : vector<2x2x128xf32>
    %cst_86 = arith.constant 1.000000e+00 : f32
    %159 = vector.broadcast %cst_86 : f32 to vector<2x2x128xf32>
    %160 = arith.divf %159, %158 : vector<2x2x128xf32>
    %c0_87 = arith.constant 0 : index
    %c1_88 = arith.constant 1 : index
    %c0_89 = arith.constant 0 : index
    %c0_90 = arith.constant 0 : index
    %161 = vector.load %arg6[%c0_87, %c1_88, %c0_89, %c0_90] : memref<2x4x2x128xf32, #tpu.memory_space<vmem>>, vector<2x1x2x128xf32>
    %162 = vector.shape_cast %161 : vector<2x1x2x128xf32> to vector<2x2x128xf32>
    %163 = vector.shape_cast %160 : vector<2x2x128xf32> to vector<2x1x2x128xf32>
    tpu.vector_store %arg6[%c0_87, %c1_88, %c0_89, %c0_90], %163 {strides = array<i32>} : memref<2x4x2x128xf32, #tpu.memory_space<vmem>>, vector<2x1x2x128xf32>,
    %c2_91 = arith.constant 2 : index
    %c0_92 = arith.constant 0 : index
    %164 = memref.load %arg3[%c2_91, %c0_92] : memref<4x4xf32, #tpu.memory_space<smem>>
    %165 = vector.broadcast %164 : f32 to vector<2x2x128xf32>
    %166 = arith.mulf %32, %165 : vector<2x2x128xf32>
    %c2_93 = arith.constant 2 : index
    %c1_94 = arith.constant 1 : index
    %167 = memref.load %arg3[%c2_93, %c1_94] : memref<4x4xf32, #tpu.memory_space<smem>>
    %168 = vector.broadcast %167 : f32 to vector<2x2x128xf32>
    %169 = arith.mulf %57, %168 : vector<2x2x128xf32>
    %170 = arith.addf %166, %169 : vector<2x2x128xf32>
    %c2_95 = arith.constant 2 : index
    %c2_96 = arith.constant 2 : index
    %171 = memref.load %arg3[%c2_95, %c2_96] : memref<4x4xf32, #tpu.memory_space<smem>>
    %172 = vector.broadcast %171 : f32 to vector<2x2x128xf32>
    %173 = arith.mulf %82, %172 : vector<2x2x128xf32>
    %174 = arith.addf %170, %173 : vector<2x2x128xf32>
    %c2_97 = arith.constant 2 : index
    %c3_98 = arith.constant 3 : index
    %175 = memref.load %arg3[%c2_97, %c3_98] : memref<4x4xf32, #tpu.memory_space<smem>>
    %176 = vector.broadcast %175 : f32 to vector<2x2x128xf32>
    %177 = arith.mulf %107, %176 : vector<2x2x128xf32>
    %178 = arith.addf %174, %177 : vector<2x2x128xf32>
    %c2_99 = arith.constant 2 : index
    %179 = memref.load %arg4[%c2_99] : memref<4xf32, #tpu.memory_space<smem>>
    %180 = vector.broadcast %179 : f32 to vector<2x2x128xf32>
    %181 = arith.addf %178, %180 : vector<2x2x128xf32>
    %cst_100 = arith.constant 0.000000e+00 : f32
    %182 = vector.broadcast %cst_100 : f32 to vector<2x2x128xf32>
    %183 = arith.subf %182, %181 : vector<2x2x128xf32>
    %184 = math.exp %183 : vector<2x2x128xf32>
    %cst_101 = arith.constant 1.000000e+00 : f32
    %185 = vector.broadcast %cst_101 : f32 to vector<2x2x128xf32>
    %186 = arith.addf %185, %184 : vector<2x2x128xf32>
    %cst_102 = arith.constant 1.000000e+00 : f32
    %187 = vector.broadcast %cst_102 : f32 to vector<2x2x128xf32>
    %188 = arith.divf %187, %186 : vector<2x2x128xf32>
    %c0_103 = arith.constant 0 : index
    %c2_104 = arith.constant 2 : index
    %c0_105 = arith.constant 0 : index
    %c0_106 = arith.constant 0 : index
    %189 = vector.load %arg6[%c0_103, %c2_104, %c0_105, %c0_106] : memref<2x4x2x128xf32, #tpu.memory_space<vmem>>, vector<2x1x2x128xf32>
    %190 = vector.shape_cast %189 : vector<2x1x2x128xf32> to vector<2x2x128xf32>
    %191 = vector.shape_cast %188 : vector<2x2x128xf32> to vector<2x1x2x128xf32>
    tpu.vector_store %arg6[%c0_103, %c2_104, %c0_105, %c0_106], %191 {strides = array<i32>} : memref<2x4x2x128xf32, #tpu.memory_space<vmem>>, vector<2x1x2x128xf32>,
    %c3_107 = arith.constant 3 : index
    %c0_108 = arith.constant 0 : index
    %192 = memref.load %arg3[%c3_107, %c0_108] : memref<4x4xf32, #tpu.memory_space<smem>>
    %193 = vector.broadcast %192 : f32 to vector<2x2x128xf32>
    %194 = arith.mulf %32, %193 : vector<2x2x128xf32>
    %c3_109 = arith.constant 3 : index
    %c1_110 = arith.constant 1 : index
    %195 = memref.load %arg3[%c3_109, %c1_110] : memref<4x4xf32, #tpu.memory_space<smem>>
    %196 = vector.broadcast %195 : f32 to vector<2x2x128xf32>
    %197 = arith.mulf %57, %196 : vector<2x2x128xf32>
    %198 = arith.addf %194, %197 : vector<2x2x128xf32>
    %c3_111 = arith.constant 3 : index
    %c2_112 = arith.constant 2 : index
    %199 = memref.load %arg3[%c3_111, %c2_112] : memref<4x4xf32, #tpu.memory_space<smem>>
    %200 = vector.broadcast %199 : f32 to vector<2x2x128xf32>
    %201 = arith.mulf %82, %200 : vector<2x2x128xf32>
    %202 = arith.addf %198, %201 : vector<2x2x128xf32>
    %c3_113 = arith.constant 3 : index
    %c3_114 = arith.constant 3 : index
    %203 = memref.load %arg3[%c3_113, %c3_114] : memref<4x4xf32, #tpu.memory_space<smem>>
    %204 = vector.broadcast %203 : f32 to vector<2x2x128xf32>
    %205 = arith.mulf %107, %204 : vector<2x2x128xf32>
    %206 = arith.addf %202, %205 : vector<2x2x128xf32>
    %c3_115 = arith.constant 3 : index
    %207 = memref.load %arg4[%c3_115] : memref<4xf32, #tpu.memory_space<smem>>
    %208 = vector.broadcast %207 : f32 to vector<2x2x128xf32>
    %209 = arith.addf %206, %208 : vector<2x2x128xf32>
    %cst_116 = arith.constant 0.000000e+00 : f32
    %210 = vector.broadcast %cst_116 : f32 to vector<2x2x128xf32>
    %211 = arith.subf %210, %209 : vector<2x2x128xf32>
    %212 = math.exp %211 : vector<2x2x128xf32>
    %cst_117 = arith.constant 1.000000e+00 : f32
    %213 = vector.broadcast %cst_117 : f32 to vector<2x2x128xf32>
    %214 = arith.addf %213, %212 : vector<2x2x128xf32>
    %cst_118 = arith.constant 1.000000e+00 : f32
    %215 = vector.broadcast %cst_118 : f32 to vector<2x2x128xf32>
    %216 = arith.divf %215, %214 : vector<2x2x128xf32>
    %c0_119 = arith.constant 0 : index
    %c3_120 = arith.constant 3 : index
    %c0_121 = arith.constant 0 : index
    %c0_122 = arith.constant 0 : index
    %217 = vector.load %arg6[%c0_119, %c3_120, %c0_121, %c0_122] : memref<2x4x2x128xf32, #tpu.memory_space<vmem>>, vector<2x1x2x128xf32>
    %218 = vector.shape_cast %217 : vector<2x1x2x128xf32> to vector<2x2x128xf32>
    %219 = vector.shape_cast %216 : vector<2x2x128xf32> to vector<2x1x2x128xf32>
    tpu.vector_store %arg6[%c0_119, %c3_120, %c0_121, %c0_122], %219 {strides = array<i32>} : memref<2x4x2x128xf32, #tpu.memory_space<vmem>>, vector<2x1x2x128xf32>,
    return
  }
  func.func @transform_0(%arg0: i32) -> (i32, i32) {
    %c0_i32 = arith.constant 0 : i32
    %c0_i32_0 = arith.constant 0 : i32
    %c0_i32_1 = arith.constant 0 : i32
    return %c0_i32, %c0_i32_0 : i32, i32
  }
  func.func @transform_1(%arg0: i32) -> i32 {
    %c0_i32 = arith.constant 0 : i32
    %c0_i32_0 = arith.constant 0 : i32
    return %c0_i32 : i32
  }
  func.func @transform_2(%arg0: i32) -> (i32, i32) {
    %c0_i32 = arith.constant 0 : i32
    %c0_i32_0 = arith.constant 0 : i32
    %c0_i32_1 = arith.constant 0 : i32
    return %c0_i32, %c0_i32_0 : i32, i32
  }
  func.func @transform_3(%arg0: i32) -> i32 {
    %c0_i32 = arith.constant 0 : i32
    %c0_i32_0 = arith.constant 0 : i32
    return %c0_i32 : i32
  }
  func.func @transform_4(%arg0: i32) -> (i32, i32, i32, i32) {
    %c0_i32 = arith.constant 0 : i32
    %c0_i32_0 = arith.constant 0 : i32
    %c0_i32_1 = arith.constant 0 : i32
    %c0_i32_2 = arith.constant 0 : i32
    return %c0_i32, %c0_i32_0, %arg0, %c0_i32_1 : i32, i32, i32, i32
  }
  func.func @transform_5(%arg0: i32) -> (i32, i32, i32, i32) {
    %c0_i32 = arith.constant 0 : i32
    %c0_i32_0 = arith.constant 0 : i32
    %c0_i32_1 = arith.constant 0 : i32
    %c0_i32_2 = arith.constant 0 : i32
    return %c0_i32, %c0_i32_0, %arg0, %c0_i32_1 : i32, i32, i32, i32
  }
}

</mosaic_0001>

<llo_original>
// kernel: sample_module2_forward.1
$region0: #{sample_module2_forward.1}
  #allocation0 [shape = 'u32[]', space=smem, size = 0x4, offset = 0x4, fixed_abs, tag = 'smem constant byte address 0x4 - core index']
  #allocation1 [shape = 'u32[144,128]{1,0:T(1,128)}', space=vmem, size = 0x12000, scoped, tag = 'internal scratch']
  %s0 = inlined_call_operand.vmem [shape: f32[4,4], index: 0, kind: input, shape index: {}]
  %s1 = inlined_call_operand.vmem [shape: f32[4], index: 1, kind: input, shape index: {}]
  %s2 = inlined_call_operand.vmem [shape: f32[4,4], index: 2, kind: input, shape index: {}]
  %s3 = inlined_call_operand.vmem [shape: f32[4], index: 3, kind: input, shape index: {}]
  %s4 = inlined_call_operand.vmem [shape: f32[2,4,2,128], index: 4, kind: input, shape index: {}]
  %s5 = inlined_call_operand.vmem [shape: f32[2,4,2,128], index: 5, kind: output, shape index: {}]
  %s6 = sld [smem:[#allocation0]]
  $region46: #{sample_module2_forward.1} parent=0
    _
  %s8 = ssub.s32 1, %s6
  %s9 = scalar_select 0, %s8, %s6
  $region1: #{sample_module2_forward.1} parent=0
    #allocation2 [shape = 'u8[2048]{0}', space=smem, size = 0x800, scoped, tag = 'input window, operand 0, single buffered']
    #allocation3 [shape = 's32[1]{0}', space=sflag, size = 0x4, scoped, tag = 'scoped memory for sample_module2_forward.1']
    #allocation4 [shape = 'u8[512]{0}', space=smem, size = 0x200, scoped, tag = 'input window, operand 1, single buffered']
    #allocation5 [shape = 's32[1]{0}', space=sflag, size = 0x4, scoped, tag = 'scoped memory for sample_module2_forward.1']
    #allocation6 [shape = 'u8[2048]{0}', space=smem, size = 0x800, scoped, tag = 'input window, operand 2, single buffered']
    #allocation7 [shape = 'u8[512]{0}', space=smem, size = 0x200, scoped, tag = 'input window, operand 3, single buffered']
    #allocation8 [shape = 's32[1]{0}', space=sflag, size = 0x4, scoped, tag = 'scoped memory for sample_module2_forward.1']
    %10 = vsyncpa [#allocation3], 0
    %11 = vsyncpa [#allocation5], 0
    %12 = vsyncpa [#allocation8], 0
    // Predicated region
    $region2: #{sample_module2_forward.1} parent=1 // pred_check
      _
    $region3: #{sample_module2_forward.1} parent=1 // pred_check_branch
      %14 = sbr.rel (0) target = $region5
    $region4: #{sample_module2_forward.1} parent=1 // pred_region
      %s16 = ssub.s32 64, 64
      %17 = vsyncadd [#allocation3], %s16
      %s19 = sshll.u32 %s0, 4
      %s20 = int_to_ptr.vmem [resolvable:$true] %s19
      %22 = dma.vmem_to_smem %s20, 64, [#allocation2], [#allocation3]
    $region5: #{sample_module2_forward.1} parent=1 // pred_fallthru
      _
    // Predicated region
    $region6: #{sample_module2_forward.1} parent=1 // pred_check
      _
    $region7: #{sample_module2_forward.1} parent=1 // pred_check_branch
      %24 = sbr.rel (0) target = $region9
    $region8: #{sample_module2_forward.1} parent=1 // pred_region
      %s26 = ssub.s32 16, 16
      %27 = vsyncadd [#allocation5], %s26
      %s29 = sshll.u32 %s1, 4
      %s30 = int_to_ptr.vmem [resolvable:$true] %s29
      %32 = dma.vmem_to_smem %s30, 16, [#allocation4], [#allocation5]
    $region9: #{sample_module2_forward.1} parent=1 // pred_fallthru
      _
    // Predicated region
    $region10: #{sample_module2_forward.1} parent=1 // pred_check
      _
    $region11: #{sample_module2_forward.1} parent=1 // pred_check_branch
      %34 = sbr.rel (0) target = $region13
    $region12: #{sample_module2_forward.1} parent=1 // pred_region
      %s36 = ssub.s32 64, 64
      %37 = vsyncadd [#allocation5], %s36
      %s39 = sshll.u32 %s2, 4
      %s40 = int_to_ptr.vmem [resolvable:$true] %s39
      %42 = dma.vmem_to_smem %s40, 64, [#allocation6], [#allocation5]
    $region13: #{sample_module2_forward.1} parent=1 // pred_fallthru
      _
    // Predicated region
    $region14: #{sample_module2_forward.1} parent=1 // pred_check
      _
    $region15: #{sample_module2_forward.1} parent=1 // pred_check_branch
      %44 = sbr.rel (0) target = $region17
    $region16: #{sample_module2_forward.1} parent=1 // pred_region
      %s46 = ssub.s32 16, 16
      %47 = vsyncadd [#allocation8], %s46
      %s49 = sshll.u32 %s3, 4
      %s50 = int_to_ptr.vmem [resolvable:$true] %s49
      %52 = dma.vmem_to_smem %s50, 16, [#allocation7], [#allocation8]
    $region17: #{sample_module2_forward.1} parent=1 // pred_fallthru
      _
    // Predicated region
    $region18: #{sample_module2_forward.1} parent=1 // pred_check
      _
    $region19: #{sample_module2_forward.1} parent=1 // pred_check_branch
      %54 = sbr.rel (0) target = $region21
    $region20: #{sample_module2_forward.1} parent=1 // pred_region
      _
    $region21: #{sample_module2_forward.1} parent=1 // pred_fallthru
      _
    // Predicated region
    $region22: #{sample_module2_forward.1} parent=1 // pred_check
      _
    $region23: #{sample_module2_forward.1} parent=1 // pred_check_branch
      %56 = sbr.rel (0) target = $region25
    $region24: #{sample_module2_forward.1} parent=1 // pred_region
      %57 = dma.done [#allocation3], 64
    $region25: #{sample_module2_forward.1} parent=1 // pred_fallthru
      _
    // Predicated region
    $region26: #{sample_module2_forward.1} parent=1 // pred_check
      _
    $region27: #{sample_module2_forward.1} parent=1 // pred_check_branch
      %59 = sbr.rel (0) target = $region29
    $region28: #{sample_module2_forward.1} parent=1 // pred_region
      %60 = dma.done [#allocation5], 16
    $region29: #{sample_module2_forward.1} parent=1 // pred_fallthru
      _
    // Predicated region
    $region30: #{sample_module2_forward.1} parent=1 // pred_check
      _
    $region31: #{sample_module2_forward.1} parent=1 // pred_check_branch
      %62 = sbr.rel (0) target = $region33
    $region32: #{sample_module2_forward.1} parent=1 // pred_region
      %63 = dma.done [#allocation5], 64
    $region33: #{sample_module2_forward.1} parent=1 // pred_fallthru
      _
    // Predicated region
    $region34: #{sample_module2_forward.1} parent=1 // pred_check
      _
    $region35: #{sample_module2_forward.1} parent=1 // pred_check_branch
      %65 = sbr.rel (0) target = $region37
    $region36: #{sample_module2_forward.1} parent=1 // pred_region
      %66 = dma.done [#allocation8], 16
    $region37: #{sample_module2_forward.1} parent=1 // pred_fallthru
      _
    %67 = sfence
    %v68 = vld [vmem:[%s4] sm:$0x3]
    %v69 = vld [vmem:[%s4 + $0x8] sm:$0x3]
    %s70 = scalar_lea.vmem %s4, 2
    %v71 = vld [vmem:[%s70] sm:$0x3]
    %v72 = vld [vmem:[%s70 + $0x8] sm:$0x3]
    %s73 = scalar_lea.vmem %s4, 4
    %v74 = vld [vmem:[%s73] sm:$0x3]
    %v75 = vld [vmem:[%s73 + $0x8] sm:$0x3]
    %s76 = scalar_lea.vmem %s4, 6
    %v77 = vld [vmem:[%s76] sm:$0x3]
    %v78 = vld [vmem:[%s76 + $0x8] sm:$0x3]
    %s79 = sld [smem:[#allocation2]]
    %v80 = vstv %s79
    %v81 = vmul.f32 %v68, %v80
    %v82 = vmul.f32 %v69, %v80
    %s83 = sld [smem:[#allocation2 + $0x1]]
    %v84 = vstv %s83
    %v85 = vmul.f32 %v71, %v84
    %v86 = vmul.f32 %v72, %v84
    %v87 = vadd.f32 %v81, %v85
    %v88 = vadd.f32 %v82, %v86
    %s89 = sld [smem:[#allocation2 + $0x2]]
    %v90 = vstv %s89
    %v91 = vmul.f32 %v74, %v90
    %v92 = vmul.f32 %v75, %v90
    %v93 = vadd.f32 %v87, %v91
    %v94 = vadd.f32 %v88, %v92
    %s95 = sld [smem:[#allocation2 + $0x3]]
    %v96 = vstv %s95
    %v97 = vmul.f32 %v77, %v96
    %v98 = vmul.f32 %v78, %v96
    %v99 = vadd.f32 %v93, %v97
    %v100 = vadd.f32 %v94, %v98
    %s101 = sld [smem:[#allocation4]]
    %v102 = vstv %s101
    %v103 = vadd.f32 %v99, %v102
    %v104 = vadd.f32 %v100, %v102
    %v105 = vsub.f32 0.0, %v103
    %v106 = vsub.f32 0.0, %v104
    %v107 = vmul.f32 %v105, 1.442695
    %v108 = vpow.pop %v107
    %v109 = vmul.f32 %v106, 1.442695
    %v110 = vpow.pop %v109
    %v111 = vadd.f32 %v108, 1.0
    %v112 = vadd.f32 %v110, 1.0
    %v113 = vrcp.pop %v111
    %v114 = vmul.f32 1.0, %v113
    %v115 = vrcp.pop %v112
    %v116 = vmul.f32 1.0, %v115
    %s117 = sld [smem:[#allocation2 + $0x80]]
    %v118 = vstv %s117
    %v119 = vmul.f32 %v68, %v118
    %v120 = vmul.f32 %v69, %v118
    %s121 = sld [smem:[#allocation2 + $0x81]]
    %v122 = vstv %s121
    %v123 = vmul.f32 %v71, %v122
    %v124 = vmul.f32 %v72, %v122
    %v125 = vadd.f32 %v119, %v123
    %v126 = vadd.f32 %v120, %v124
    %s127 = sld [smem:[#allocation2 + $0x82]]
    %v128 = vstv %s127
    %v129 = vmul.f32 %v74, %v128
    %v130 = vmul.f32 %v75, %v128
    %v131 = vadd.f32 %v125, %v129
    %v132 = vadd.f32 %v126, %v130
    %s133 = sld [smem:[#allocation2 + $0x83]]
    %v134 = vstv %s133
    %v135 = vmul.f32 %v77, %v134
    %v136 = vmul.f32 %v78, %v134
    %v137 = vadd.f32 %v131, %v135
    %v138 = vadd.f32 %v132, %v136
    %s139 = sld [smem:[#allocation4 + $0x1]]
    %v140 = vstv %s139
    %v141 = vadd.f32 %v137, %v140
    %v142 = vadd.f32 %v138, %v140
    %v143 = vsub.f32 0.0, %v141
    %v144 = vsub.f32 0.0, %v142
    %v145 = vmul.f32 %v143, 1.442695
    %v146 = vpow.pop %v145
    %v147 = vmul.f32 %v144, 1.442695
    %v148 = vpow.pop %v147
    %v149 = vadd.f32 %v146, 1.0
    %v150 = vadd.f32 %v148, 1.0
    %v151 = vrcp.pop %v149
    %v152 = vmul.f32 1.0, %v151
    %v153 = vrcp.pop %v150
    %v154 = vmul.f32 1.0, %v153
    %s155 = sld [smem:[#allocation2 + $0x100]]
    %v156 = vstv %s155
    %v157 = vmul.f32 %v68, %v156
    %v158 = vmul.f32 %v69, %v156
    %s159 = sld [smem:[#allocation2 + $0x101]]
    %v160 = vstv %s159
    %v161 = vmul.f32 %v71, %v160
    %v162 = vmul.f32 %v72, %v160
    %v163 = vadd.f32 %v157, %v161
    %v164 = vadd.f32 %v158, %v162
    %s165 = sld [smem:[#allocation2 + $0x102]]
    %v166 = vstv %s165
    %v167 = vmul.f32 %v74, %v166
    %v168 = vmul.f32 %v75, %v166
    %v169 = vadd.f32 %v163, %v167
    %v170 = vadd.f32 %v164, %v168
    %s171 = sld [smem:[#allocation2 + $0x103]]
    %v172 = vstv %s171
    %v173 = vmul.f32 %v77, %v172
    %v174 = vmul.f32 %v78, %v172
    %v175 = vadd.f32 %v169, %v173
    %v176 = vadd.f32 %v170, %v174
    %s177 = sld [smem:[#allocation4 + $0x2]]
    %v178 = vstv %s177
    %v179 = vadd.f32 %v175, %v178
    %v180 = vadd.f32 %v176, %v178
    %v181 = vsub.f32 0.0, %v179
    %v182 = vsub.f32 0.0, %v180
    %v183 = vmul.f32 %v181, 1.442695
    %v184 = vpow.pop %v183
    %v185 = vmul.f32 %v182, 1.442695
    %v186 = vpow.pop %v185
    %v187 = vadd.f32 %v184, 1.0
    %v188 = vadd.f32 %v186, 1.0
    %v189 = vrcp.pop %v187
    %v190 = vmul.f32 1.0, %v189
    %v191 = vrcp.pop %v188
    %v192 = vmul.f32 1.0, %v191
    %s193 = sld [smem:[#allocation2 + $0x180]]
    %v194 = vstv %s193
    %v195 = vmul.f32 %v68, %v194
    %v196 = vmul.f32 %v69, %v194
    %s197 = sld [smem:[#allocation2 + $0x181]]
    %v198 = vstv %s197
    %v199 = vmul.f32 %v71, %v198
    %v200 = vmul.f32 %v72, %v198
    %v201 = vadd.f32 %v195, %v199
    %v202 = vadd.f32 %v196, %v200
    %s203 = sld [smem:[#allocation2 + $0x182]]
    %v204 = vstv %s203
    %v205 = vmul.f32 %v74, %v204
    %v206 = vmul.f32 %v75, %v204
    %v207 = vadd.f32 %v201, %v205
    %v208 = vadd.f32 %v202, %v206
    %s209 = sld [smem:[#allocation2 + $0x183]]
    %v210 = vstv %s209
    %v211 = vmul.f32 %v77, %v210
    %v212 = vmul.f32 %v78, %v210
    %v213 = vadd.f32 %v207, %v211
    %v214 = vadd.f32 %v208, %v212
    %s215 = sld [smem:[#allocation4 + $0x3]]
    %v216 = vstv %s215
    %v217 = vadd.f32 %v213, %v216
    %v218 = vadd.f32 %v214, %v216
    %v219 = vsub.f32 0.0, %v217
    %v220 = vsub.f32 0.0, %v218
    %v221 = vmul.f32 %v219, 1.442695
    %v222 = vpow.pop %v221
    %v223 = vmul.f32 %v220, 1.442695
    %v224 = vpow.pop %v223
    %v225 = vadd.f32 %v222, 1.0
    %v226 = vadd.f32 %v224, 1.0
    %v227 = vrcp.pop %v225
    %v228 = vmul.f32 1.0, %v227
    %v229 = vrcp.pop %v226
    %v230 = vmul.f32 1.0, %v229
    %s231 = sld [smem:[#allocation6]]
    %v232 = vstv %s231
    %v233 = vmul.f32 %v114, %v232
    %v234 = vmul.f32 %v116, %v232
    %s235 = sld [smem:[#allocation6 + $0x1]]
    %v236 = vstv %s235
    %v237 = vmul.f32 %v152, %v236
    %v238 = vmul.f32 %v154, %v236
    %v239 = vadd.f32 %v233, %v237
    %v240 = vadd.f32 %v234, %v238
    %s241 = sld [smem:[#allocation6 + $0x2]]
    %v242 = vstv %s241
    %v243 = vmul.f32 %v190, %v242
    %v244 = vmul.f32 %v192, %v242
    %v245 = vadd.f32 %v239, %v243
    %v246 = vadd.f32 %v240, %v244
    %s247 = sld [smem:[#allocation6 + $0x3]]
    %v248 = vstv %s247
    %v249 = vmul.f32 %v228, %v248
    %v250 = vmul.f32 %v230, %v248
    %v251 = vadd.f32 %v245, %v249
    %v252 = vadd.f32 %v246, %v250
    %s253 = sld [smem:[#allocation7]]
    %v254 = vstv %s253
    %v255 = vadd.f32 %v251, %v254
    %v256 = vadd.f32 %v252, %v254
    %v257 = vsub.f32 0.0, %v255
    %v258 = vsub.f32 0.0, %v256
    %v259 = vmul.f32 %v257, 1.442695
    %v260 = vpow.pop %v259
    %v261 = vmul.f32 %v258, 1.442695
    %v262 = vpow.pop %v261
    %v263 = vadd.f32 %v260, 1.0
    %v264 = vadd.f32 %v262, 1.0
    %v265 = vrcp.pop %v263
    %v266 = vmul.f32 1.0, %v265
    %v267 = vrcp.pop %v264
    %v268 = vmul.f32 1.0, %v267
    %269 = vst [vmem:[%s5] sm:$0x3] %v266
    %270 = vst [vmem:[%s5 + $0x8] sm:$0x3] %v268
    %s271 = sld [smem:[#allocation6 + $0x80]]
    %v272 = vstv %s271
    %v273 = vmul.f32 %v114, %v272
    %v274 = vmul.f32 %v116, %v272
    %s275 = sld [smem:[#allocation6 + $0x81]]
    %v276 = vstv %s275
    %v277 = vmul.f32 %v152, %v276
    %v278 = vmul.f32 %v154, %v276
    %v279 = vadd.f32 %v273, %v277
    %v280 = vadd.f32 %v274, %v278
    %s281 = sld [smem:[#allocation6 + $0x82]]
    %v282 = vstv %s281
    %v283 = vmul.f32 %v190, %v282
    %v284 = vmul.f32 %v192, %v282
    %v285 = vadd.f32 %v279, %v283
    %v286 = vadd.f32 %v280, %v284
    %s287 = sld [smem:[#allocation6 + $0x83]]
    %v288 = vstv %s287
    %v289 = vmul.f32 %v228, %v288
    %v290 = vmul.f32 %v230, %v288
    %v291 = vadd.f32 %v285, %v289
    %v292 = vadd.f32 %v286, %v290
    %s293 = sld [smem:[#allocation7 + $0x1]]
    %v294 = vstv %s293
    %v295 = vadd.f32 %v291, %v294
    %v296 = vadd.f32 %v292, %v294
    %v297 = vsub.f32 0.0, %v295
    %v298 = vsub.f32 0.0, %v296
    %v299 = vmul.f32 %v297, 1.442695
    %v300 = vpow.pop %v299
    %v301 = vmul.f32 %v298, 1.442695
    %v302 = vpow.pop %v301
    %v303 = vadd.f32 %v300, 1.0
    %v304 = vadd.f32 %v302, 1.0
    %v305 = vrcp.pop %v303
    %v306 = vmul.f32 1.0, %v305
    %v307 = vrcp.pop %v304
    %v308 = vmul.f32 1.0, %v307
    %s309 = scalar_lea.vmem %s5, 2
    %310 = vst [vmem:[%s309] sm:$0x3] %v306
    %311 = vst [vmem:[%s309 + $0x8] sm:$0x3] %v308
    %s312 = sld [smem:[#allocation6 + $0x100]]
    %v313 = vstv %s312
    %v314 = vmul.f32 %v114, %v313
    %v315 = vmul.f32 %v116, %v313
    %s316 = sld [smem:[#allocation6 + $0x101]]
    %v317 = vstv %s316
    %v318 = vmul.f32 %v152, %v317
    %v319 = vmul.f32 %v154, %v317
    %v320 = vadd.f32 %v314, %v318
    %v321 = vadd.f32 %v315, %v319
    %s322 = sld [smem:[#allocation6 + $0x102]]
    %v323 = vstv %s322
    %v324 = vmul.f32 %v190, %v323
    %v325 = vmul.f32 %v192, %v323
    %v326 = vadd.f32 %v320, %v324
    %v327 = vadd.f32 %v321, %v325
    %s328 = sld [smem:[#allocation6 + $0x103]]
    %v329 = vstv %s328
    %v330 = vmul.f32 %v228, %v329
    %v331 = vmul.f32 %v230, %v329
    %v332 = vadd.f32 %v326, %v330
    %v333 = vadd.f32 %v327, %v331
    %s334 = sld [smem:[#allocation7 + $0x2]]
    %v335 = vstv %s334
    %v336 = vadd.f32 %v332, %v335
    %v337 = vadd.f32 %v333, %v335
    %v338 = vsub.f32 0.0, %v336
    %v339 = vsub.f32 0.0, %v337
    %v340 = vmul.f32 %v338, 1.442695
    %v341 = vpow.pop %v340
    %v342 = vmul.f32 %v339, 1.442695
    %v343 = vpow.pop %v342
    %v344 = vadd.f32 %v341, 1.0
    %v345 = vadd.f32 %v343, 1.0
    %v346 = vrcp.pop %v344
    %v347 = vmul.f32 1.0, %v346
    %v348 = vrcp.pop %v345
    %v349 = vmul.f32 1.0, %v348
    %s350 = scalar_lea.vmem %s5, 4
    %351 = vst [vmem:[%s350] sm:$0x3] %v347
    %352 = vst [vmem:[%s350 + $0x8] sm:$0x3] %v349
    %s353 = sld [smem:[#allocation6 + $0x180]]
    %v354 = vstv %s353
    %v355 = vmul.f32 %v114, %v354
    %v356 = vmul.f32 %v116, %v354
    %s357 = sld [smem:[#allocation6 + $0x181]]
    %v358 = vstv %s357
    %v359 = vmul.f32 %v152, %v358
    %v360 = vmul.f32 %v154, %v358
    %v361 = vadd.f32 %v355, %v359
    %v362 = vadd.f32 %v356, %v360
    %s363 = sld [smem:[#allocation6 + $0x182]]
    %v364 = vstv %s363
    %v365 = vmul.f32 %v190, %v364
    %v366 = vmul.f32 %v192, %v364
    %v367 = vadd.f32 %v361, %v365
    %v368 = vadd.f32 %v362, %v366
    %s369 = sld [smem:[#allocation6 + $0x183]]
    %v370 = vstv %s369
    %v371 = vmul.f32 %v228, %v370
    %v372 = vmul.f32 %v230, %v370
    %v373 = vadd.f32 %v367, %v371
    %v374 = vadd.f32 %v368, %v372
    %s375 = sld [smem:[#allocation7 + $0x3]]
    %v376 = vstv %s375
    %v377 = vadd.f32 %v373, %v376
    %v378 = vadd.f32 %v374, %v376
    %v379 = vsub.f32 0.0, %v377
    %v380 = vsub.f32 0.0, %v378
    %v381 = vmul.f32 %v379, 1.442695
    %v382 = vpow.pop %v381
    %v383 = vmul.f32 %v380, 1.442695
    %v384 = vpow.pop %v383
    %v385 = vadd.f32 %v382, 1.0
    %v386 = vadd.f32 %v384, 1.0
    %v387 = vrcp.pop %v385
    %v388 = vmul.f32 1.0, %v387
    %v389 = vrcp.pop %v386
    %v390 = vmul.f32 1.0, %v389
    %s391 = scalar_lea.vmem %s5, 6
    %392 = vst [vmem:[%s391] sm:$0x3] %v388
    %393 = vst [vmem:[%s391 + $0x8] sm:$0x3] %v390
    // Predicated region
    $region38: #{sample_module2_forward.1} parent=1 // pred_check
      _
    $region39: #{sample_module2_forward.1} parent=1 // pred_check_branch
      %395 = sbr.rel (0) target = $region41
    $region40: #{sample_module2_forward.1} parent=1 // pred_region
      _
    $region41: #{sample_module2_forward.1} parent=1 // pred_fallthru
      _
    // Predicated region
    $region42: #{sample_module2_forward.1} parent=1 // pred_check
      _
    $region43: #{sample_module2_forward.1} parent=1 // pred_check_branch
      %397 = sbr.rel (0) target = $region45
    $region44: #{sample_module2_forward.1} parent=1 // pred_region
      _
    $region45: #{sample_module2_forward.1} parent=1 // pred_fallthru
      _
    %398 = vsyncpa [#allocation3], 1
    %399 = vsyncpa [#allocation5], 1
    %400 = vsyncpa [#allocation8], 1

</llo_original>
